<compile_context>
chip_gen: v7x
topology: tpu7x:2x2x1
jax: 0.10.0
libtpu: 0.0.40
codegen_flags: <defaults>
</compile_context>

<pallas_src>
import functools

import jax
import jax.numpy as jnp
from jax.experimental import pallas as pl
from jax.experimental.pallas import tpu as pltpu


LANE = 128          # vreg lane width (last-dim alignment target)
SUBLANE = 8         # sublane height
TILE_M_MAX = 512    # token-tile height (MXU-aligned; ~85% roofline per measurements)
TILE_K_MAX = 2048   # split the Hm (reduction) axis beyond this to bound VMEM


def _round_up(x, m):
    return (x + m - 1) // m * m


def _pick_vmem_limit_bytes():
    """Per-generation VMEM budget with headroom (128 MiB v5e/v6e, 64 MiB/TC v7x)."""
    cap = 64 * 1024 * 1024  # conservative fallback (v7x per-TC)
    try:
        info = pltpu.get_tpu_info()
        cap = int(getattr(info, "vmem_capacity_bytes", cap))
    except Exception:
        pass
    return min(int(cap * 3 // 4), 96 * 1024 * 1024)


def _pick_tile_m(m):
    """>=2 grid steps when possible (v7x megacore balance), capped at TILE_M_MAX."""
    tm = min(TILE_M_MAX, _round_up(pl.cdiv(m, 2), SUBLANE))
    return max(tm, SUBLANE)


def _pick_tile_k(hm):
    """Exact divisor of Hm (no ragged reduction blocks -> no garbage in the acc)."""
    if hm <= TILE_K_MAX or hm % LANE != 0:
        return hm                      # keep the whole reduction resident
    tk = TILE_K_MAX
    while hm % tk != 0:
        tk -= LANE
    return max(tk, LANE)


# ----------------------------------------------------------------------------
# Pallas kernel: fused (aspect ++ opinion) projection with K-axis accumulator
#   h      : (tile_m, tile_k)  bf16  -- token tile x feature chunk
#   w_cat  : (tile_k, Hcat)    bf16  -- [w_aspect|pad | w_opinion|pad] chunk
#   b_cat  : (1, Hcat)         f32   -- [b_aspect|pad | b_opinion|pad]
#   out    : (tile_m, Hcat)    bf16  -- lane-dense (Hcat multiple of 128)
#   acc    : (tile_m, Hcat)    f32   -- VMEM scratch accumulator
# ----------------------------------------------------------------------------
def _fused_projection_kernel(h_ref, w_ref, b_ref, out_ref, acc_ref):
    k = pl.program_id(1)

    @pl.when(k == 0)
    def _():
        acc_ref[...] = jnp.zeros_like(acc_ref)

    acc_ref[...] += jnp.dot(h_ref[...], w_ref[...],
                            preferred_element_type=jnp.float32)

    @pl.when(k == pl.num_programs(1) - 1)
    def _():
        # bias add in f32, store bf16 (halves HBM write traffic vs f32 output)
        out_ref[...] = (acc_ref[...] + b_ref[...]).astype(out_ref.dtype)


def fused_projection(h2d_bf16, w_cat_bf16, b_cat_f32, *, tile_m, tile_k):
    """h2d_bf16: (M, Hm) bf16 (M may be ragged). Returns (M, Hcat) bf16."""
    M, Hm = h2d_bf16.shape
    Hcat = w_cat_bf16.shape[1]
    grid_m = pl.cdiv(M, tile_m)        # ragged last block: writes past M are clipped
    grid_k = Hm // tile_k              # tile_k always divides Hm exactly

    out_dtype = jnp.bfloat16
    flops = 2 * M * Hm * Hcat
    bytes_accessed = (M * Hm * h2d_bf16.dtype.itemsize
                      + Hm * Hcat * w_cat_bf16.dtype.itemsize
                      + Hcat * b_cat_f32.dtype.itemsize
                      + M * Hcat * jnp.dtype(out_dtype).itemsize)

    return pl.pallas_call(
        _fused_projection_kernel,
        out_shape=jax.ShapeDtypeStruct((M, Hcat), out_dtype),
        grid_spec=pltpu.PrefetchScalarGridSpec(
            num_scalar_prefetch=0,
            grid=(grid_m, grid_k),
            in_specs=[
                # token tile streams over (i, k)
                pl.BlockSpec((tile_m, tile_k), lambda i, k: (i, k)),
                # weight chunk streams over k only
                pl.BlockSpec((tile_k, Hcat), lambda i, k: (k, 0)),
                # bias stays resident
                pl.BlockSpec((1, Hcat), lambda i, k: (0, 0)),
            ],
            out_specs=pl.BlockSpec((tile_m, Hcat), lambda i, k: (i, 0)),
            scratch_shapes=[pltpu.VMEM((tile_m, Hcat), jnp.float32)],
        ),
        compiler_params=pltpu.CompilerParams(
            # token-tile axis is independent -> shard across TCs on v7x;
            # Hm axis is a reduction -> arbitrary (last in grid).
            dimension_semantics=("parallel", "arbitrary"),
            vmem_limit_bytes=_pick_vmem_limit_bytes(),
        ),
        cost_estimate=pl.CostEstimate(flops=flops, transcendentals=0,
                                      bytes_accessed=bytes_accessed),
    )(h2d_bf16, w_cat_bf16, b_cat_f32)


# ----------------------------------------------------------------------------
# One-time parameter preparation (outside jit): bf16 token table, fused weights
# with each projection half lane-padded to a multiple of 128.
# ----------------------------------------------------------------------------
def prepare_params(raw):
    Ho = raw["w_aspect"].shape[1]
    pad = _round_up(Ho, LANE) - Ho
    w_cat = jnp.concatenate(
        [jnp.pad(raw["w_aspect"], ((0, 0), (0, pad))),
         jnp.pad(raw["w_opinion"], ((0, 0), (0, pad)))], axis=1)
    b_cat = jnp.concatenate(
        [jnp.pad(raw["b_aspect"], ((0, 0), (0, pad))),
         jnp.pad(raw["b_opinion"], ((0, 0), (0, pad)))], axis=1)
    return {
        "token_emb": raw["token_emb"].astype(jnp.bfloat16),  # gather yields bf16
        "w_cat": w_cat.astype(jnp.bfloat16),
        "b_cat": b_cat.astype(jnp.float32),
    }


# ----------------------------------------------------------------------------
# LLMEmbedding forward (inference semantics: dropout = identity)
# ----------------------------------------------------------------------------
@functools.partial(jax.jit, static_argnames=("hidden_size",))
def llm_embedding_forward(params, input_ids, attention_mask, *, hidden_size):
    """Returns dict with 'aspect_embeddings', 'opinion_embeddings', 'hidden_states'
    (all bf16 -- flagged precision change vs. the f32 PyTorch reference)."""
    B, S = input_ids.shape
    Hm = params["token_emb"].shape[1]
    Hcat = params["w_cat"].shape[1]
    Hp = Hcat // 2
    Ho = hidden_size

    # TODO(synk): the real module runs the pretrained HF Stella v5 encoder to
    # produce hidden_states; a deterministic bf16 token-embedding lookup stands
    # in for it here (no clean in-script Pallas equivalent for the encoder).
    hidden_states = jnp.take(params["token_emb"], input_ids, axis=0)  # [B,S,Hm] bf16
    # attention_mask is consumed only by the encoder in the reference; the
    # projections themselves are mask-independent.
    del attention_mask

    M = B * S
    h2d = hidden_states.reshape(M, Hm)          # already bf16; no cast, no row-pad

    tile_m = _pick_tile_m(M)
    tile_k = _pick_tile_k(Hm)

    out = fused_projection(h2d, params["w_cat"], params["b_cat"],
                           tile_m=tile_m, tile_k=tile_k)   # (M, Hcat) bf16

    # Lane-aligned, contiguous column slices (each half starts at a 128 multiple).
    aspect = out[:, :Ho].reshape(B, S, Ho)
    opinion = out[:, Hp:Hp + Ho].reshape(B, S, Ho)
    return {
        "aspect_embeddings": aspect,     # dropout = identity at inference
        "opinion_embeddings": opinion,
        "hidden_states": hidden_states,
    }


# ----------------------------------------------------------------------------
# Deterministic parameter construction (synthetic, no checkpoint)
# ----------------------------------------------------------------------------
def init_params(key, vocab_size, model_hidden_size, hidden_size):
    k = jax.random.split(key, 5)
    scale_in = 1.0 / jnp.sqrt(model_hidden_size)
    return {
        "token_emb": jax.random.normal(k[0], (vocab_size, model_hidden_size),
                                       jnp.float32) * 0.02,
        "w_aspect": jax.random.normal(k[1], (model_hidden_size, hidden_size),
                                      jnp.float32) * scale_in,
        "b_aspect": jax.random.normal(k[2], (1, hidden_size), jnp.float32) * 0.01,
        "w_opinion": jax.random.normal(k[3], (model_hidden_size, hidden_size),
                                       jnp.float32) * scale_in,
        "b_opinion": jax.random.normal(k[4], (1, hidden_size), jnp.float32) * 0.01,
    }


if __name__ == "__main__":
    # Small shapes consistent with the module's forward:
    #   input_ids / attention_mask: [B, S]; encoder hidden = 64; config.hidden_size = 32.
    # (Real Stella sizes -- Hm ~1K, B*S in the thousands -- exercise the full
    #  tiling/pipelining path; these toy shapes are for correctness only.)
    B, S = 2, 8
    VOCAB = 128
    MODEL_HIDDEN = 64     # stand-in for encoder.config.hidden_size
    HIDDEN = 32           # config.hidden_size

    key = jax.random.PRNGKey(0)
    pkey, ikey = jax.random.split(key)
    raw_params = init_params(pkey, VOCAB, MODEL_HIDDEN, HIDDEN)
    params = prepare_params(raw_params)

    input_ids = jax.random.randint(ikey, (B, S), 0, VOCAB, dtype=jnp.int32)
    attention_mask = jnp.ones((B, S), dtype=jnp.int32)

    out = llm_embedding_forward(params, input_ids, attention_mask, hidden_size=HIDDEN)
    jax.block_until_ready(out)

    # Cross-check the Pallas hot path against plain JAX using the same
    # bf16-input / f32-accumulate / bf16-output math.
    h2d = out["hidden_states"].reshape(B * S, MODEL_HIDDEN)          # bf16
    ref_a = (jnp.dot(h2d, raw_params["w_aspect"].astype(jnp.bfloat16),
                     preferred_element_type=jnp.float32)
             + raw_params["b_aspect"]).astype(jnp.bfloat16).reshape(B, S, HIDDEN)
    ref_o = (jnp.dot(h2d, raw_params["w_opinion"].astype(jnp.bfloat16),
                     preferred_element_type=jnp.float32)
             + raw_params["b_opinion"]).astype(jnp.bfloat16).reshape(B, S, HIDDEN)

    assert out["aspect_embeddings"].shape == (B, S, HIDDEN)
    assert out["opinion_embeddings"].shape == (B, S, HIDDEN)
    assert out["hidden_states"].shape == (B, S, MODEL_HIDDEN)
    assert out["aspect_embeddings"].dtype == jnp.bfloat16
    assert jnp.allclose(out["aspect_embeddings"].astype(jnp.float32),
                        ref_a.astype(jnp.float32), atol=2e-3, rtol=2e-2)
    assert jnp.allclose(out["opinion_embeddings"].astype(jnp.float32),
                        ref_o.astype(jnp.float32), atol=2e-3, rtol=2e-2)

    print("KERNEL_OK")
</pallas_src>

<mosaic_0001>
module attributes {stable_mosaic.version = 11 : i64} {
  func.func @_fused_projection_kernel(%arg0: i32, %arg1: i32, %arg2: memref<8x64xbf16, #tpu.memory_space<vmem>>, %arg3: memref<64x256xbf16, #tpu.memory_space<vmem>>, %arg4: memref<1x256xf32, #tpu.memory_space<vmem>>, %arg5: memref<8x256xbf16, #tpu.memory_space<vmem>>, %arg6: memref<8x256xf32, #tpu.memory_space<vmem>>) attributes {dimension_semantics = [#tpu.dimension_semantics<parallel>, #tpu.dimension_semantics<arbitrary>], iteration_bounds = array<i64: 2, 1>, scalar_prefetch = 0 : i64, scratch_operands = 1 : i64, tpu.core_type = #tpu.core_type<tc>, window_params = [{transform_indices = @transform_0, window_bounds = array<i64: 8, 64>}, {transform_indices = @transform_1, window_bounds = array<i64: 64, 256>}, {pipeline_mode = #tpu.pipeline_mode<synchronous>, transform_indices = @transform_2, window_bounds = array<i64: 1, 256>}, {transform_indices = @transform_3, window_bounds = array<i64: 8, 256>}]} {
    %c0_i32 = arith.constant 0 : i32
    %0 = arith.cmpi eq, %arg1, %c0_i32 : i32
    %1 = arith.extui %0 : i1 to i32
    %c0_i32_0 = arith.constant 0 : i32
    %2 = arith.cmpi ne, %1, %c0_i32_0 : i32
    scf.if %2 {
      %cst_10 = arith.constant 0.000000e+00 : f32
      %12 = vector.broadcast %cst_10 : f32 to vector<8x256xf32>
      %c0_11 = arith.constant 0 : index
      %c0_12 = arith.constant 0 : index
      %13 = vector.load %arg6[%c0_11, %c0_12] : memref<8x256xf32, #tpu.memory_space<vmem>>, vector<8x256xf32>
      tpu.vector_store %arg6[%c0_11, %c0_12], %12 {strides = array<i32>} : memref<8x256xf32, #tpu.memory_space<vmem>>, vector<8x256xf32>,
    } else {
    }
    %c0 = arith.constant 0 : index
    %c0_1 = arith.constant 0 : index
    %3 = vector.load %arg6[%c0, %c0_1] : memref<8x256xf32, #tpu.memory_space<vmem>>, vector<8x256xf32>
    %c0_2 = arith.constant 0 : index
    %c0_3 = arith.constant 0 : index
    %4 = vector.load %arg2[%c0_2, %c0_3] : memref<8x64xbf16, #tpu.memory_space<vmem>>, vector<8x64xbf16>
    %c0_4 = arith.constant 0 : index
    %c0_5 = arith.constant 0 : index
    %5 = vector.load %arg3[%c0_4, %c0_5] : memref<64x256xbf16, #tpu.memory_space<vmem>>, vector<64x256xbf16>
    %cst = arith.constant dense<0.000000e+00> : vector<8x256xf32>
    %6 = tpu.matmul %4, %5, %cst {dimension_numbers = #tpu.dot_dimension_numbers<[1], [0], [0], [1], [0, 0, 1, 1], [], []>} : vector<8x64xbf16>, vector<64x256xbf16>, vector<8x256xf32> -> vector<8x256xf32>
    %7 = arith.addf %3, %6 : vector<8x256xf32>
    %c0_6 = arith.constant 0 : index
    %c0_7 = arith.constant 0 : index
    %8 = vector.load %arg6[%c0_6, %c0_7] : memref<8x256xf32, #tpu.memory_space<vmem>>, vector<8x256xf32>
    tpu.vector_store %arg6[%c0_6, %c0_7], %7 {strides = array<i32>} : memref<8x256xf32, #tpu.memory_space<vmem>>, vector<8x256xf32>,
    %c0_i32_8 = arith.constant 0 : i32
    %9 = arith.cmpi eq, %arg1, %c0_i32_8 : i32
    %10 = arith.extui %9 : i1 to i32
    %c0_i32_9 = arith.constant 0 : i32
    %11 = arith.cmpi ne, %10, %c0_i32_9 : i32
    scf.if %11 {
      %c0_10 = arith.constant 0 : index
      %c0_11 = arith.constant 0 : index
      %12 = vector.load %arg6[%c0_10, %c0_11] : memref<8x256xf32, #tpu.memory_space<vmem>>, vector<8x256xf32>
      %c0_12 = arith.constant 0 : index
      %c0_13 = arith.constant 0 : index
      %13 = vector.load %arg4[%c0_12, %c0_13] : memref<1x256xf32, #tpu.memory_space<vmem>>, vector<1x256xf32>
      %14 = vector.broadcast %13 : vector<1x256xf32> to vector<8x256xf32>
      %15 = arith.addf %12, %14 : vector<8x256xf32>
      %16 = arith.truncf %15 : vector<8x256xf32> to vector<8x256xbf16>
      %c0_14 = arith.constant 0 : index
      %c0_15 = arith.constant 0 : index
      %17 = vector.load %arg5[%c0_14, %c0_15] : memref<8x256xbf16, #tpu.memory_space<vmem>>, vector<8x256xbf16>
      tpu.vector_store %arg5[%c0_14, %c0_15], %16 {strides = array<i32>} : memref<8x256xbf16, #tpu.memory_space<vmem>>, vector<8x256xbf16>,
    } else {
    }
    return
  }
  func.func @transform_0(%arg0: i32, %arg1: i32) -> (i32, i32) {
    %c0_i32 = arith.constant 0 : i32
    return %arg0, %arg1 : i32, i32
  }
  func.func @transform_1(%arg0: i32, %arg1: i32) -> (i32, i32) {
    %c0_i32 = arith.constant 0 : i32
    %c0_i32_0 = arith.constant 0 : i32
    return %arg1, %c0_i32 : i32, i32
  }
  func.func @transform_2(%arg0: i32, %arg1: i32) -> (i32, i32) {
    %c0_i32 = arith.constant 0 : i32
    %c0_i32_0 = arith.constant 0 : i32
    %c0_i32_1 = arith.constant 0 : i32
    return %c0_i32, %c0_i32_0 : i32, i32
  }
  func.func @transform_3(%arg0: i32, %arg1: i32) -> (i32, i32) {
    %c0_i32 = arith.constant 0 : i32
    %c0_i32_0 = arith.constant 0 : i32
    return %arg0, %c0_i32 : i32, i32
  }
}

</mosaic_0001>

<llo_original>
// kernel: llm_embedding_forward.1
$region0: #{llm_embedding_forward.1}
  #allocation0 [shape = 'u32[]', space=smem, size = 0x4, offset = 0x4, fixed_abs, tag = 'smem constant byte address 0x4 - core index']
  #allocation1 [shape = 'u32[144,128]{1,0:T(1,128)}', space=vmem, size = 0x12000, scoped, tag = 'internal scratch']
  #allocation2 [shape = 'f32[8,256]{1,0:T(8,128)}', space=vmem, size = 0x2000, scoped, tag = 'scratch operand']
  %s0 = inlined_call_operand.vmem [shape: bf16[16,64], index: 0, kind: input, shape index: {}]
  %s1 = inlined_call_operand.vmem [shape: bf16[64,256], index: 1, kind: input, shape index: {}]
  %s2 = inlined_call_operand.vmem [shape: f32[1,256], index: 2, kind: input, shape index: {}]
  %s3 = inlined_call_operand.vmem [shape: bf16[16,256], index: 3, kind: output, shape index: {}]
  %s4 = sld [smem:[#allocation0]]
  $region53: #{llm_embedding_forward.1} parent=0
    _
  %s6 = ssub.s32 1, %s4
  %s7 = scalar_select 0, %s6, %s4
  loop: start=0, step=1, limit=4
  $region2: #{llm_embedding_forward.1} parent=0 // loop_pre_header
    _
  $region3: #{llm_embedding_forward.1} parent=0 // loop_header
    %s9 = sphi 0, %s13
    %p10 = scmp.ge.s32.totalorder %s9, 4
    %s16 = sphi 0, %s28
    %s17 = sphi 0, %s24
    %s18 = sphi 0, %s16
    %s19 = sphi 0, %s17
    %s20 = sphi 0, %s18
    %s21 = sphi 0, %s19
    %s33 = sphi 0, %s35
    %s36 = sphi 0, %s33
    %s37 = sphi 0, %s36
    %s53 = sphi 0, %s37
    %s59 = sphi 0, %s61
    %s62 = sphi 0, %s59
    %s63 = sphi 0, %s62
    %s79 = sphi 0, %s63
    %s83 = sphi 0, %s83
    %s85 = sphi 0, %s83
    %s86 = sphi 0, %s85
    %s100 = sphi 0, %s86
    %s106 = sphi 0, %s108
    %s109 = sphi 0, %s106
    %s110 = sphi 0, %s109
    %s126 = sphi 0, %s110
  $region4: #{llm_embedding_forward.1} parent=0 // loop_header_branch
    %12 = sbr.rel (%p10) target = $region8
  $region5: #{llm_embedding_forward.1} parent=0 // loop_body
    %s14 = ssub.s32 %s9, 1
    %s15 = ssub.s32 %s9, 2
    %s22 = sadd.s32 1, %s17
    %p23 = scmp.ge.s32.totalorder %s22, 1
    %s24 = scalar_select %p23, 0, %s22
    %s25 = sadd.s32 1, %s16
    %s26 = scalar_select %p23, %s25, %s16
    %p27 = scmp.ge.s32.totalorder %s26, 2
    %s28 = scalar_select %p27, 0, %s26
    %s29 = ssub.s32 %s16, %s28
    %s30 = ssub.s32 %s17, %s24
    %s31 = sor.u32 %s29, %s30
    %p32 = scmp.eq.s32.totalorder %s31, 0
    %s34 = sadd.s32 %s33, 1
    %s35 = scalar_select %p32, %s33, %s34
    %p38 = pneg %p32
    %p39 = scmp.eq.s32.totalorder %s9, 1
    %p40 = por %p38, %p39
    %p41 = scmp.ne.s32.totalorder %s33, %s36
    %p42 = scmp.eq.s32.totalorder %s9, 0
    %p43 = por %p41, %p42
    %p44 = scmp.ne.s32.totalorder %s33, %s36
    %p45 = scmp.eq.s32.totalorder %s14, 1
    %p46 = por %p44, %p45
    %p47 = scmp.ne.s32.totalorder %s36, %s37
    %p48 = scmp.eq.s32.totalorder %s14, 0
    %p49 = por %p47, %p48
    %p50 = scmp.ne.s32.totalorder %s36, %s37
    %p51 = scmp.eq.s32.totalorder %s15, 1
    %p52 = por %p50, %p51
    %p54 = scmp.ne.s32.totalorder %s37, %s53
    %p55 = scmp.eq.s32.totalorder %s15, 0
    %p56 = por %p54, %p55
    %s57 = ssub.s32 %s17, %s24
    %p58 = scmp.eq.s32.totalorder %s57, 0
    %s60 = sadd.s32 %s59, 1
    %s61 = scalar_select %p58, %s59, %s60
    %p64 = pneg %p58
    %p65 = scmp.eq.s32.totalorder %s9, 1
    %p66 = por %p64, %p65
    %p67 = scmp.ne.s32.totalorder %s59, %s62
    %p68 = scmp.eq.s32.totalorder %s9, 0
    %p69 = por %p67, %p68
    %p70 = scmp.ne.s32.totalorder %s59, %s62
    %p71 = scmp.eq.s32.totalorder %s14, 1
    %p72 = por %p70, %p71
    %p73 = scmp.ne.s32.totalorder %s62, %s63
    %p74 = scmp.eq.s32.totalorder %s14, 0
    %p75 = por %p73, %p74
    %p76 = scmp.ne.s32.totalorder %s62, %s63
    %p77 = scmp.eq.s32.totalorder %s15, 1
    %p78 = por %p76, %p77
    %p80 = scmp.ne.s32.totalorder %s63, %s79
    %p81 = scmp.eq.s32.totalorder %s15, 0
    %p82 = por %p80, %p81
    %s84 = sadd.s32 %s83, 1
    %p87 = scmp.eq.s32.totalorder %s9, 1
    %p88 = scmp.ne.s32.totalorder %s83, %s85
    %p89 = scmp.eq.s32.totalorder %s9, 0
    %p90 = por %p88, %p89
    %p91 = scmp.ne.s32.totalorder %s83, %s85
    %p92 = scmp.eq.s32.totalorder %s14, 1
    %p93 = por %p91, %p92
    %p94 = scmp.ne.s32.totalorder %s85, %s86
    %p95 = scmp.eq.s32.totalorder %s14, 0
    %p96 = por %p94, %p95
    %p97 = scmp.ne.s32.totalorder %s85, %s86
    %p98 = scmp.eq.s32.totalorder %s15, 1
    %p99 = por %p97, %p98
    %p101 = scmp.ne.s32.totalorder %s86, %s100
    %p102 = scmp.eq.s32.totalorder %s15, 0
    %p103 = por %p101, %p102
    %s104 = ssub.s32 %s16, %s28
    %p105 = scmp.eq.s32.totalorder %s104, 0
    %s107 = sadd.s32 %s106, 1
    %s108 = scalar_select %p105, %s106, %s107
    %p111 = pneg %p105
    %p112 = scmp.eq.s32.totalorder %s9, 1
    %p113 = por %p111, %p112
    %p114 = scmp.ne.s32.totalorder %s106, %s109
    %p115 = scmp.eq.s32.totalorder %s9, 0
    %p116 = por %p114, %p115
    %p117 = scmp.ne.s32.totalorder %s106, %s109
    %p118 = scmp.eq.s32.totalorder %s14, 1
    %p119 = por %p117, %p118
    %p120 = scmp.ne.s32.totalorder %s109, %s110
    %p121 = scmp.eq.s32.totalorder %s14, 0
    %p122 = por %p120, %p121
    %p123 = scmp.ne.s32.totalorder %s109, %s110
    %p124 = scmp.eq.s32.totalorder %s15, 1
    %p125 = por %p123, %p124
    %p127 = scmp.ne.s32.totalorder %s110, %s126
    %p128 = scmp.eq.s32.totalorder %s15, 0
    %p129 = por %p127, %p128
    %p130 = scmp.le.s32.totalorder 1, %s9
    %p131 = scmp.lt.s32.totalorder %s9, 3
    %p132 = pnand %p130, %p131
    %p133 = pneg %p132
    // Predicated region
    $region9: #{llm_embedding_forward.1} parent=5 // pred_check
      _
    $region10: #{llm_embedding_forward.1} parent=5 // pred_check_branch
      %135 = sbr.rel (%p132) target = $region12
    $region11: #{llm_embedding_forward.1} parent=5 // pred_region
      %s136 = ssub.s32 %s9, 1
      // Predicated region
      $region13: #{llm_embedding_forward.1} parent=11 // pred_check
        %p137 = pneg %p75
      $region14: #{llm_embedding_forward.1} parent=11 // pred_check_branch
        %139 = sbr.rel (%p137) target = $region16
      $region15: #{llm_embedding_forward.1} parent=11 // pred_region
        %s140 = smul.u32 8, %s19
        %p141 = scmp.lt.s32.totalorder %s140, 7
        %s142 = scalar_select %p141, %s140, 7
        %s143 = smul.addr %s142, 2
        %s144 = smul.addr %s143, 4
        %s145 = scalar_lea.vmem %s1, %s144
        %s146 = smul.u32 8, %s19
      $region16: #{llm_embedding_forward.1} parent=11 // pred_fallthru
        _
      // Predicated region
      $region17: #{llm_embedding_forward.1} parent=11 // pred_check
        %p147 = pneg %p96
      $region18: #{llm_embedding_forward.1} parent=11 // pred_check_branch
        %149 = sbr.rel (%p147) target = $region20
      $region19: #{llm_embedding_forward.1} parent=11 // pred_region
        _
      $region20: #{llm_embedding_forward.1} parent=11 // pred_fallthru
        _
    $region12: #{llm_embedding_forward.1} parent=5 // pred_fallthru
      _
    %p150 = scmp.lt.s32.totalorder %s9, 2
    // Predicated region
    $region21: #{llm_embedding_forward.1} parent=5 // pred_check
      %p151 = pneg %p150
    $region22: #{llm_embedding_forward.1} parent=5 // pred_check_branch
      %153 = sbr.rel (%p151) target = $region24
    $region23: #{llm_embedding_forward.1} parent=5 // pred_region
      // Predicated region
      $region25: #{llm_embedding_forward.1} parent=23 // pred_check
        %p154 = pneg %p43
      $region26: #{llm_embedding_forward.1} parent=23 // pred_check_branch
        %156 = sbr.rel (%p154) target = $region28
      $region27: #{llm_embedding_forward.1} parent=23 // pred_region
        %p157 = scmp.lt.s32.totalorder %s16, 1
        %s158 = scalar_select %p157, %s16, 1
        %p159 = scmp.lt.s32.totalorder %s17, 0
        %s160 = scalar_select %p159, %s17, 0
        %s161 = sadd.s32 %s160, %s158
        %s162 = smul.addr %s161, 4
        %s163 = scalar_lea.vmem %s0, %s162
      $region28: #{llm_embedding_forward.1} parent=23 // pred_fallthru
        _
    $region24: #{llm_embedding_forward.1} parent=5 // pred_fallthru
      _
    %p164 = scmp.le.s32.totalorder 1, %s9
    %p165 = scmp.lt.s32.totalorder %s9, 3
    %p166 = pnand %p164, %p165
    %p167 = pneg %p166
    // Predicated region
    $region29: #{llm_embedding_forward.1} parent=5 // pred_check
      _
    $region30: #{llm_embedding_forward.1} parent=5 // pred_check_branch
      %169 = sbr.rel (%p166) target = $region32
    $region31: #{llm_embedding_forward.1} parent=5 // pred_region
      %s170 = ssub.s32 %s9, 1
      %p171 = scmp.lt.s32.totalorder %s18, 1
      %s172 = scalar_select %p171, %s18, 1
      %p173 = scmp.lt.s32.totalorder %s19, 0
      %s174 = scalar_select %p173, %s19, 0
      %s175 = sadd.s32 %s174, %s172
      %s176 = smul.addr %s175, 4
      %s177 = scalar_lea.vmem %s0, %s176
      %p178 = pneg %p49
      %p179 = pneg %p46
      %s180 = smul.u32 8, %s19
      %p181 = scmp.lt.s32.totalorder %s180, 7
      %s182 = scalar_select %p181, %s180, 7
      %s183 = smul.addr %s182, 2
      %s184 = smul.addr %s183, 4
      %s185 = scalar_lea.vmem %s1, %s184
      %p186 = pneg %p75
      %p187 = pneg %p72
      %p188 = pneg %p96
      %p189 = pneg %p93
      %p190 = pneg %p122
      %p191 = pneg %p119
      %p192 = scmp.lt.s32.totalorder %s18, 1
      %s193 = scalar_select %p192, %s18, 1
      %s194 = smul.addr %s193, 2
      %s195 = smul.addr %s194, 4
      %s196 = scalar_lea.vmem %s3, %s195
      %p197 = scmp.lt.s32.totalorder %s18, 1
      %s198 = scalar_select %p197, %s18, 1
      %p199 = scmp.lt.s32.totalorder %s19, 0
      %s200 = scalar_select %p199, %s19, 0
      %s201 = sadd.s32 %s200, %s198
      %s202 = smul.addr %s201, 4
      %s203 = scalar_lea.vmem %s0, %s202
      %s204 = smul.u32 8, %s19
      %p205 = scmp.lt.s32.totalorder %s204, 7
      %s206 = scalar_select %p205, %s204, 7
      %s207 = smul.addr %s206, 2
      %s208 = smul.addr %s207, 4
      %s209 = scalar_lea.vmem %s1, %s208
      %s210 = smul.u32 8, %s19
      %p211 = scmp.lt.s32.totalorder %s18, 1
      %s212 = scalar_select %p211, %s18, 1
      %s213 = smul.addr %s212, 2
      %s214 = smul.addr %s213, 4
      %s215 = scalar_lea.vmem %s3, %s214
      %p217 = scmp.eq.s32.totalorder %s19, 0
      // Predicated region
      $region33: #{llm_embedding_forward.1} parent=31 // pred_check
        %p218 = pneg %p217
      $region34: #{llm_embedding_forward.1} parent=31 // pred_check_branch
        %220 = sbr.rel (%p218) target = $region36
      $region35: #{llm_embedding_forward.1} parent=31 // pred_region
        %221 = vst [vmem:[#allocation2] sm:$0xff] 0.0
        %222 = vst [vmem:[#allocation2 + $0x8] sm:$0xff] 0.0
      $region36: #{llm_embedding_forward.1} parent=31 // pred_fallthru
        _
      %v223 = vld [vmem:[#allocation2] sm:$0xff]
      %v224 = vld [vmem:[#allocation2 + $0x8] sm:$0xff]
      %v225 = vld [vmem:[%s203] sm:$0xf]
      %v226 = vld [vmem:[%s209] sm:$0xff]
      %v227 = vld [vmem:[%s209 + $0x8] sm:$0xff]
      %v228 = vld [vmem:[%s209 + $0x10] sm:$0xff]
      %v229 = vld [vmem:[%s209 + $0x18] sm:$0xff]
      %v230 = vld [vmem:[%s209 + $0x20] sm:$0xff]
      %v231 = vld [vmem:[%s209 + $0x28] sm:$0xff]
      %v232 = vld [vmem:[%s209 + $0x30] sm:$0xff]
      %v233 = vld [vmem:[%s209 + $0x38] sm:$0xff]
      %v242 = vunpack.c.l.b16 %v226
      %v243 = vunpack.c.h.b16 %v226
      %v244 = vunpack.c.l.b16 %v227
      %v245 = vunpack.c.h.b16 %v227
      %v246 = vunpack.c.l.b16 %v228
      %v247 = vunpack.c.h.b16 %v228
      %v248 = vunpack.c.l.b16 %v229
      %v249 = vunpack.c.h.b16 %v229
      %v250 = vunpack.c.l.b16 %v230
      %v251 = vunpack.c.h.b16 %v230
      %v252 = vunpack.c.l.b16 %v231
      %v253 = vunpack.c.h.b16 %v231
      %v254 = vunpack.c.l.b16 %v232
      %v255 = vunpack.c.h.b16 %v232
      %v256 = vunpack.c.l.b16 %v233
      %v257 = vunpack.c.h.b16 %v233
      %v258 = vpack.c.b16 %v244, %v242
      %v259 = vpack.c.b16 %v245, %v243
      %v260 = vpack.c.b16 %v248, %v246
      %v261 = vpack.c.b16 %v249, %v247
      %v262 = vpack.c.b16 %v252, %v250
      %v263 = vpack.c.b16 %v253, %v251
      %v264 = vpack.c.b16 %v256, %v254
      %v265 = vpack.c.b16 %v257, %v255
      %vm274 = vcmask 523264
      %v276 = vsel %vm274, %v225, 0
      %278 = vmatprep.subr.bf16.mxu0 %v259
      %279 = vmatpush1.bf16.msra.mxu0 %v258
      %280 = vmatprep.subr.bf16.mxu0 %v261
      %281 = vmatpush1.bf16.msra.mxu0 %v260
      %282 = vmatprep.subr.bf16.mxu0 %v263
      %283 = vmatpush1.bf16.msra.mxu0 %v262
      %284 = vmatprep.subr.bf16.mxu0 %v265
      %285 = vmatpush1.bf16.msra.mxu0 %v264
      %286 = vmatprep.subr.bf16.mxu0 0
      %287 = vmatpush1.bf16.msra.mxu0 0
      %288 = vmatprep.subr.bf16.mxu0 0
      %289 = vmatpush1.bf16.msra.mxu0 0
      %290 = vmatprep.subr.bf16.mxu0 0
      %291 = vmatpush1.bf16.msra.mxu0 0
      %292 = vmatprep.subr.bf16.mxu0 0
      %293 = vmatpush1.bf16.msra.mxu0 0
      %294 = vmatprep.subr.bf16.mxu0 0
      %295 = vmatpush1.bf16.msra.mxu0 0
      %296 = vmatprep.subr.bf16.mxu0 0
      %297 = vmatpush1.bf16.msra.mxu0 0
      %298 = vmatprep.subr.bf16.mxu0 0
      %299 = vmatpush1.bf16.msra.mxu0 0
      %300 = vmatprep.subr.bf16.mxu0 0
      %301 = vmatpush1.bf16.msra.mxu0 0
      %302 = vmatprep.subr.bf16.mxu0 0
      %303 = vmatpush1.bf16.msra.mxu0 0
      %304 = vmatprep.subr.bf16.mxu0 0
      %305 = vmatpush1.bf16.msra.mxu0 0
      %306 = vmatprep.subr.bf16.mxu0 0
      %307 = vmatpush1.bf16.msra.mxu0 0
      %308 = vmatprep.subr.bf16.mxu0 0
      %309 = vmatpush1.bf16.msra.mxu0 0
      %310 = vmatprep.mubr.bf16.mxu0 0
      %311 = vmatmul.mubr.bf16.gmra.mrb[0].mxu0 %v276
      %v312 = vpop.f32.mrb[0].mxu0
      %v313 = vadd.f32 0.0, %v312
      %v314 = vpop.f32.mrb[0].mxu0
      %v315 = vadd.f32 0.0, %v314
      %v316 = vpop.f32.mrb[0].mxu0
      %v317 = vpop.f32.mrb[0].mxu0
      %318 = vdwg.mxu0
      %v319 = vadd.f32 %v223, %v313
      %v320 = vadd.f32 %v224, %v315
      %321 = vst [vmem:[#allocation2] sm:$0xff] %v319
      %322 = vst [vmem:[#allocation2 + $0x8] sm:$0xff] %v320
      // Predicated region
      $region37: #{llm_embedding_forward.1} parent=31 // pred_check
        %p323 = pneg %p217
      $region38: #{llm_embedding_forward.1} parent=31 // pred_check_branch
        %325 = sbr.rel (%p323) target = $region40
      $region39: #{llm_embedding_forward.1} parent=31 // pred_region
        %v326 = vld [vmem:[#allocation2] sm:$0xff]
        %v327 = vld [vmem:[#allocation2 + $0x8] sm:$0xff]
        %v328 = vld [vmem:[%s2] sm:$0x3]
        %v330 = vlaneseq
        %v331 = vshrl.u32 %v330, 7
        %v332 = vsub.s32 0, %v331
        %v333 = vrot.slane %v328, %v332
        %v334 = vlaneseq
        %v335 = vshrl.u32 %v334, 7
        %v336 = vsub.s32 1, %v335
        %v337 = vrot.slane %v328, %v336
        %v340 = vadd.f32 %v326, %v333
        %v341 = vadd.f32 %v327, %v337
        %v342 = vpack.c.bf16 %v340, %v340
        %v343 = vpack.c.bf16 %v341, %v341
        %v346 = vunpack.c.l.b16 %v342
        %v347 = vunpack.c.l.b16 %v343
        %v348 = vpack.c.b16 %v347, %v346
        %350 = vst [vmem:[%s215] sm:$0xff] %v348
      $region40: #{llm_embedding_forward.1} parent=31 // pred_fallthru
        _
      %p351 = scmp.lt.s32.totalorder %s18, 1
      %s352 = scalar_select %p351, %s18, 1
      %s353 = smul.addr %s352, 2
      %s354 = smul.addr %s353, 4
      %s355 = scalar_lea.vmem %s3, %s354
      // Predicated region
      $region41: #{llm_embedding_forward.1} parent=31 // pred_check
        %p356 = pneg %p119
      $region42: #{llm_embedding_forward.1} parent=31 // pred_check_branch
        %358 = sbr.rel (%p356) target = $region44
      $region43: #{llm_embedding_forward.1} parent=31 // pred_region
        _
      $region44: #{llm_embedding_forward.1} parent=31 // pred_fallthru
        _
    $region32: #{llm_embedding_forward.1} parent=5 // pred_fallthru
      _
    %p359 = scmp.le.s32.totalorder 2, %s9
    // Predicated region
    $region45: #{llm_embedding_forward.1} parent=5 // pred_check
      %p360 = pneg %p359
    $region46: #{llm_embedding_forward.1} parent=5 // pred_check_branch
      %362 = sbr.rel (%p360) target = $region48
    $region47: #{llm_embedding_forward.1} parent=5 // pred_region
      %s363 = ssub.s32 %s9, 2
      // Predicated region
      $region49: #{llm_embedding_forward.1} parent=47 // pred_check
        %p364 = pneg %p125
      $region50: #{llm_embedding_forward.1} parent=47 // pred_check_branch
        %366 = sbr.rel (%p364) target = $region52
      $region51: #{llm_embedding_forward.1} parent=47 // pred_region
        %p367 = scmp.lt.s32.totalorder %s20, 1
        %s368 = scalar_select %p367, %s20, 1
        %s369 = smul.addr %s368, 2
        %s370 = smul.addr %s369, 4
        %s371 = scalar_lea.vmem %s3, %s370
      $region52: #{llm_embedding_forward.1} parent=47 // pred_fallthru
        _
    $region48: #{llm_embedding_forward.1} parent=5 // pred_fallthru
      _
  $region6: #{llm_embedding_forward.1} parent=0 // loop_footer
    %s13 = sadd.s32 1, %s9
  $region7: #{llm_embedding_forward.1} parent=0 // loop_footer_branch
    %8 = sbr.rel target = $region3
  $region8: #{llm_embedding_forward.1} parent=0 // loop_exit
    _

</llo_original>
